<compile_context>
chip_gen: v7x
topology: tpu7x:2x2x1
jax: 0.10.0
libtpu: 0.0.40
codegen_flags: <defaults>
</compile_context>

<pallas_src>
import jax
import jax.numpy as jnp
from jax import lax
from jax.experimental import pallas as pl
from jax.experimental.pallas import tpu as pltpu


# ----------------------------- small helpers -------------------------------

def _round_up(x, m):
    return ((x + m - 1) // m) * m


def _vmem_capacity_bytes():
    """Physical VMEM of the local TPU generation (v7x=64MiB, v5e/v6e=128MiB)."""
    try:
        return int(pltpu.get_tpu_info().vmem_capacity_bytes)
    except Exception:
        return 64 * 1024 * 1024   # conservative (v7x-sized) fallback


def _glue_dtype():
    # Mitigates E[y^2]-E[y]^2 cancellation when x64 is enabled; otherwise stays f32.
    try:
        return jnp.float64 if jax.config.jax_enable_x64 else jnp.float32
    except Exception:
        return jnp.float32


def _stream_spec(block_shape, index_map, buffers):
    """BlockSpec for the streamed x input; buffers>2 requests deeper pipelining
    (worth sweeping on v7x where HBM is ~3.2 TB/s). Default 2 keeps VMEM math simple."""
    if buffers == 2:
        return pl.BlockSpec(block_shape, index_map)
    return pl.BlockSpec(block_shape, index_map, pipeline_mode=pl.Buffered(buffers))


def _choose_tile(S, tm_budget):
    """Pick a lane-aligned spatial tile tm and padded spatial size S_pad.

    Preference order:
      1) a single tile per batch if it fits the VMEM-derived budget,
      2) a multiple-of-128 divisor of S (no pad copy) if it is big enough,
      3) budget-sized tiles with the tail zero-padded (cdiv-style tiling).
    """
    tm_budget = max(128, (tm_budget // 128) * 128)
    S128 = _round_up(S, 128)
    if S128 <= tm_budget:
        return S128, S128
    if S % 128 == 0:
        best = 128
        for k in range(tm_budget // 128, 0, -1):
            d = k * 128
            if S % d == 0:
                best = d
                break
        if best >= max(2048, tm_budget // 4):
            return best, S
    n_tiles = -(-S // tm_budget)
    return tm_budget, n_tiles * tm_budget


# ------------------------------- kernels -----------------------------------

def gram_stats_kernel(x_ref, gram_ref, xsum_ref):
    """Pass 1: per-batch resident accumulators of G = x x^T and sum(x).

    x_ref:    (Cin, tm)   spatial tile on lanes, channels on sublanes
    gram_ref: (Cin, Cin)  accumulated across the (arbitrary) tile grid axis
    xsum_ref: (Cin, 1)
    """
    @pl.when(pl.program_id(1) == 0)
    def _():
        gram_ref[...] = jnp.zeros_like(gram_ref)
        xsum_ref[...] = jnp.zeros_like(xsum_ref)

    x = x_ref[...]
    # x @ x^T with the contraction over the large lane axis -> MXU-friendly K.
    gram_ref[...] += lax.dot_general(
        x, x, (((1,), (1,)), ((), ())), preferred_element_type=jnp.float32)
    xsum_ref[...] += jnp.sum(x, axis=-1, keepdims=True)


def conv_bn_act_kernel(x_ref, ws_ref, shift_ref, o_ref):
    """Pass 2: y = (bn_scale*w) @ x + shift, ReLU, lane-dense store.

    x_ref: (Cin, tm); ws_ref: (Cout, Cin); shift_ref: (Cout, 1); o_ref: (Cout, tm)
    """
    y = jnp.dot(ws_ref[...], x_ref[...], preferred_element_type=jnp.float32)
    o_ref[...] = jnp.maximum(y + shift_ref[...], 0.0).astype(o_ref.dtype)


def _make_fused_kernel(N, M, eps):
    """Single-pass kernel (whole activation VMEM-resident): stats + normalize + ReLU."""
    def fused_kernel(x_ref, w_ref, gamma_ref, beta_ref, o_ref):
        w = w_ref[...]                                               # (Cout, Cin)
        # --- batch statistics of y = w @ x via the Gram matrix of x (x read once) ---
        xb = x_ref[0]
        gram = lax.dot_general(xb, xb, (((1,), (1,)), ((), ())),
                               preferred_element_type=jnp.float32)   # (Cin, Cin)
        xsum = jnp.sum(xb, axis=-1, keepdims=True)                   # (Cin, 1)
        for n in range(1, N):                                        # small static N
            xb = x_ref[n]
            gram = gram + lax.dot_general(xb, xb, (((1,), (1,)), ((), ())),
                                          preferred_element_type=jnp.float32)
            xsum = xsum + jnp.sum(xb, axis=-1, keepdims=True)
        mean = jnp.dot(w, xsum, preferred_element_type=jnp.float32) / M      # (Cout,1)
        wg = jnp.dot(w, gram, preferred_element_type=jnp.float32)            # (Cout,Cin)
        sumsq = jnp.sum(wg * w, axis=-1, keepdims=True)                      # (Cout,1)
        var = jnp.maximum(sumsq / M - mean * mean, 0.0)
        scale = gamma_ref[...] * lax.rsqrt(var + eps)                        # (Cout,1)
        shift = beta_ref[...] - mean * scale
        ws = w * scale                                                       # fold BN scale
        for n in range(N):
            y = jnp.dot(ws, x_ref[n], preferred_element_type=jnp.float32) + shift
            o_ref[n] = jnp.maximum(y, 0.0).astype(o_ref.dtype)
    return fused_kernel


# ------------------------------- wrapper ------------------------------------

def conv_1x1x1_forward(x, w, b, gamma, beta, eps=1e-5, *,
                       x_buffers=2, force_two_pass=False):
    """x: (N, Cin, D, H, W) f32; w: (Cout, Cin); b/gamma/beta: (Cout,).

    Conv3d(k=1, bias=True) + BatchNorm3d (training stats, biased var) + ReLU.
    The conv bias `b` is accepted for interface parity but cancels exactly under
    the batch-mean subtraction, so it never enters the kernels.
    """
    del b  # cancels under training-mode BN
    N, Cin, D, H, W = x.shape
    Cout = w.shape[0]
    S = D * H * W
    M = N * S

    cap = _vmem_capacity_bytes()
    vmem_limit = max(32 << 20, min(int(0.70 * cap), 100 << 20))

    xr = x.reshape(N, Cin, S)          # pure reshape, channels stay on sublanes

    # ------------- fused single-pass path (x read from HBM once) -------------
    S128 = _round_up(S, 128)
    fused_bytes = 4 * (N * S128 * (Cin + Cout)       # resident input + output
                       + S128 * Cout                 # one batch-row f32 temp
                       + Cout * (Cin + 4) + Cin * (Cin + 1))
    if (not force_two_pass) and fused_bytes <= int(0.35 * cap):
        xp = xr if S128 == S else jnp.pad(xr, ((0, 0), (0, 0), (0, S128 - S)))
        vspec = pl.BlockSpec(memory_space=pltpu.MemorySpace.VMEM)
        out3 = pl.pallas_call(
            _make_fused_kernel(N, float(M), float(eps)),
            out_shape=jax.ShapeDtypeStruct((N, Cout, S128), jnp.float32),
            in_specs=[vspec, vspec, vspec, vspec],
            out_specs=vspec,
            compiler_params=pltpu.CompilerParams(vmem_limit_bytes=vmem_limit),
        )(xp, w, gamma.reshape(Cout, 1), beta.reshape(Cout, 1))
        return out3[:, :, :S].reshape(N, Cout, D, H, W)

    # ---------------------- two-pass streaming path --------------------------
    # Tile size from the VMEM budget: pipelined x + out columns + resident weights.
    block_budget = int(0.55 * cap)
    per_col = 4 * (x_buffers * Cin + 2 * Cout)
    weight_bytes = 2 * 4 * Cout * (Cin + 1)
    tm_budget = max(128, min((block_budget - weight_bytes) // per_col, 32768))
    tm, S_pad = _choose_tile(S, tm_budget)
    n_tiles = S_pad // tm

    # Zero padding is transparent to the statistics (we divide by the true M).
    xp = xr if S_pad == S else jnp.pad(xr, ((0, 0), (0, 0), (0, S_pad - S)))

    # pass 1: per-batch Gram / sum accumulators (tile axis resident -> "arbitrary")
    gram, xsum = pl.pallas_call(
        gram_stats_kernel,
        out_shape=(jax.ShapeDtypeStruct((N, Cin, Cin), jnp.float32),
                   jax.ShapeDtypeStruct((N, Cin, 1), jnp.float32)),
        grid_spec=pltpu.PrefetchScalarGridSpec(
            num_scalar_prefetch=0,
            grid=(N, n_tiles),
            in_specs=[_stream_spec((None, Cin, tm), lambda n, j: (n, 0, j), x_buffers)],
            out_specs=[pl.BlockSpec((None, Cin, Cin), lambda n, j: (n, 0, 0)),
                       pl.BlockSpec((None, Cin, 1), lambda n, j: (n, 0, 0))],
        ),
        compiler_params=pltpu.CompilerParams(
            dimension_semantics=("parallel", "arbitrary"),
            vmem_limit_bytes=vmem_limit),
    )(xp)

    # glue: tiny per-channel math.
    # TODO(synk): Chan's parallel-variance combine for extremely large M in pure f32.
    gd = _glue_dtype()
    G = jnp.sum(gram.astype(gd), axis=0)             # (Cin, Cin)
    sx = jnp.sum(xsum.astype(gd), axis=0)[:, 0]      # (Cin,)
    wf = w.astype(gd)
    mean = (wf @ sx) / M                             # (Cout,)
    sumsq = jnp.einsum("oi,ij,oj->o", wf, G, wf)     # (Cout,)
    var = jnp.maximum(sumsq / M - mean * mean, 0.0)  # biased batch variance
    scale = gamma.astype(gd) / jnp.sqrt(var + eps)
    shift = beta.astype(gd) - mean * scale
    w_scaled = (wf * scale[:, None]).astype(jnp.float32)
    shift2 = shift.astype(jnp.float32).reshape(Cout, 1)

    # pass 2: conv (BN scale folded) + shift + ReLU over a flattened parallel grid
    T = N * n_tiles
    idx = lambda i, nt=n_tiles: (i // nt, 0, i % nt)
    out3 = pl.pallas_call(
        conv_bn_act_kernel,
        out_shape=jax.ShapeDtypeStruct((N, Cout, S_pad), jnp.float32),
        grid_spec=pltpu.PrefetchScalarGridSpec(
            num_scalar_prefetch=0,
            grid=(T,),
            in_specs=[_stream_spec((None, Cin, tm), idx, x_buffers),
                      pl.BlockSpec((Cout, Cin), lambda i: (0, 0)),
                      pl.BlockSpec((Cout, 1), lambda i: (0, 0))],
            out_specs=pl.BlockSpec((None, Cout, tm), idx),
        ),
        compiler_params=pltpu.CompilerParams(
            dimension_semantics=("parallel",),
            vmem_limit_bytes=vmem_limit),
    )(xp, w_scaled, shift2)

    return out3[:, :, :S].reshape(N, Cout, D, H, W)


# ------------------------------ reference -----------------------------------

def reference_forward(x, w, b, gamma, beta, eps=1e-5):
    """Pure-JAX reference matching PyTorch Conv3d(k=1)+BatchNorm3d(train)+ReLU."""
    y = jnp.einsum("ncdhw,oc->nodhw", x, w) + b[None, :, None, None, None]
    mean = jnp.mean(y, axis=(0, 2, 3, 4), keepdims=True)
    var = jnp.mean((y - mean) ** 2, axis=(0, 2, 3, 4), keepdims=True)
    yn = (y - mean) / jnp.sqrt(var + eps)
    yn = yn * gamma[None, :, None, None, None] + beta[None, :, None, None, None]
    return jnp.maximum(yn, 0.0)


if __name__ == "__main__":
    key = jax.random.PRNGKey(0)

    def _run_case(case_id, N, Cin, Cout, D, H, W, force_two_pass):
        kx, kw, kb = jax.random.split(jax.random.fold_in(key, case_id), 3)
        x = jax.random.normal(kx, (N, Cin, D, H, W), dtype=jnp.float32)
        w = jax.random.normal(kw, (Cout, Cin), dtype=jnp.float32) * 0.1
        b = jax.random.normal(kb, (Cout,), dtype=jnp.float32) * 0.1
        gamma = 1.0 + 0.1 * jnp.arange(Cout, dtype=jnp.float32)
        beta = 0.05 * jnp.arange(Cout, dtype=jnp.float32)

        out = conv_1x1x1_forward(x, w, b, gamma, beta,
                                 force_two_pass=force_two_pass)
        out = jax.block_until_ready(out)
        ref = reference_forward(x, w, b, gamma, beta)
        assert out.shape == ref.shape, f"case {case_id}: bad shape {out.shape}"
        assert jnp.allclose(out, ref, atol=2e-4, rtol=2e-4), \
            f"case {case_id}: mismatch vs reference"

    # fused single-pass path (activation fits VMEM), S a multiple of 128
    _run_case(0, 2, 4, 8, 8, 8, 8, force_two_pass=False)
    # two-pass streaming path on the same shapes
    _run_case(1, 2, 4, 8, 8, 8, 8, force_two_pass=True)
    # non-128-multiple spatial size (zero-padded tail), two-pass
    _run_case(2, 2, 3, 6, 5, 6, 7, force_two_pass=True)
    # non-128-multiple spatial size, fused path, N=1
    _run_case(3, 1, 5, 7, 6, 6, 6, force_two_pass=False)

    print("KERNEL_OK")
</pallas_src>

<mosaic_0001>
module attributes {stable_mosaic.version = 11 : i64} {
  func.func @fused_kernel(%arg0: memref<2x4x512xf32, #tpu.memory_space<vmem>>, %arg1: memref<8x4xf32, #tpu.memory_space<vmem>>, %arg2: memref<8x1xf32, #tpu.memory_space<vmem>>, %arg3: memref<8x1xf32, #tpu.memory_space<vmem>>, %arg4: memref<2x8x512xf32, #tpu.memory_space<vmem>>) attributes {dimension_semantics = [], scalar_prefetch = 0 : i64, scratch_operands = 0 : i64, tpu.core_type = #tpu.core_type<tc>} {
    %c0 = arith.constant 0 : index
    %c0_0 = arith.constant 0 : index
    %0 = vector.load %arg1[%c0, %c0_0] : memref<8x4xf32, #tpu.memory_space<vmem>>, vector<8x4xf32>
    %c0_1 = arith.constant 0 : index
    %c0_2 = arith.constant 0 : index
    %c0_3 = arith.constant 0 : index
    %1 = vector.load %arg0[%c0_1, %c0_2, %c0_3] : memref<2x4x512xf32, #tpu.memory_space<vmem>>, vector<1x4x512xf32>
    %2 = vector.shape_cast %1 : vector<1x4x512xf32> to vector<4x512xf32>
    %cst = arith.constant dense<0.000000e+00> : vector<4x4xf32>
    %3 = tpu.matmul %2, %2, %cst {dimension_numbers = #tpu.dot_dimension_numbers<[1], [1], [0], [0], [0, 0, 1, 0], [], []>} : vector<4x512xf32>, vector<4x512xf32>, vector<4x4xf32> -> vector<4x4xf32>
    %cst_4 = arith.constant dense<0.000000e+00> : vector<4xf32>
    %4 = vector.multi_reduction <add>, %2, %cst_4 [1] : vector<4x512xf32> to vector<4xf32>
    %5 = vector.shape_cast %4 : vector<4xf32> to vector<4x1xf32>
    %c1 = arith.constant 1 : index
    %c0_5 = arith.constant 0 : index
    %c0_6 = arith.constant 0 : index
    %6 = vector.load %arg0[%c1, %c0_5, %c0_6] : memref<2x4x512xf32, #tpu.memory_space<vmem>>, vector<1x4x512xf32>
    %7 = vector.shape_cast %6 : vector<1x4x512xf32> to vector<4x512xf32>
    %cst_7 = arith.constant dense<0.000000e+00> : vector<4x4xf32>
    %8 = tpu.matmul %7, %7, %cst_7 {dimension_numbers = #tpu.dot_dimension_numbers<[1], [1], [0], [0], [0, 0, 1, 0], [], []>} : vector<4x512xf32>, vector<4x512xf32>, vector<4x4xf32> -> vector<4x4xf32>
    %9 = arith.addf %3, %8 : vector<4x4xf32>
    %cst_8 = arith.constant dense<0.000000e+00> : vector<4xf32>
    %10 = vector.multi_reduction <add>, %7, %cst_8 [1] : vector<4x512xf32> to vector<4xf32>
    %11 = vector.shape_cast %10 : vector<4xf32> to vector<4x1xf32>
    %12 = arith.addf %5, %11 : vector<4x1xf32>
    %cst_9 = arith.constant dense<0.000000e+00> : vector<8x1xf32>
    %13 = tpu.matmul %0, %12, %cst_9 {dimension_numbers = #tpu.dot_dimension_numbers<[1], [0], [0], [1], [0, 0, 1, 1], [], []>} : vector<8x4xf32>, vector<4x1xf32>, vector<8x1xf32> -> vector<8x1xf32>
    %cst_10 = arith.constant 1.024000e+03 : f32
    %14 = vector.broadcast %cst_10 : f32 to vector<8x1xf32>
    %15 = arith.divf %13, %14 : vector<8x1xf32>
    %cst_11 = arith.constant dense<0.000000e+00> : vector<8x4xf32>
    %16 = tpu.matmul %0, %9, %cst_11 {dimension_numbers = #tpu.dot_dimension_numbers<[1], [0], [0], [1], [0, 0, 1, 1], [], []>} : vector<8x4xf32>, vector<4x4xf32>, vector<8x4xf32> -> vector<8x4xf32>
    %17 = arith.mulf %16, %0 : vector<8x4xf32>
    %cst_12 = arith.constant dense<0.000000e+00> : vector<8xf32>
    %18 = vector.multi_reduction <add>, %17, %cst_12 [1] : vector<8x4xf32> to vector<8xf32>
    %19 = vector.shape_cast %18 : vector<8xf32> to vector<8x1xf32>
    %cst_13 = arith.constant 1.024000e+03 : f32
    %20 = vector.broadcast %cst_13 : f32 to vector<8x1xf32>
    %21 = arith.divf %19, %20 : vector<8x1xf32>
    %22 = arith.mulf %15, %15 : vector<8x1xf32>
    %23 = arith.subf %21, %22 : vector<8x1xf32>
    %cst_14 = arith.constant 0.000000e+00 : f32
    %24 = vector.broadcast %cst_14 : f32 to vector<8x1xf32>
    %25 = arith.maximumf %23, %24 : vector<8x1xf32>
    %c0_15 = arith.constant 0 : index
    %c0_16 = arith.constant 0 : index
    %26 = vector.load %arg2[%c0_15, %c0_16] : memref<8x1xf32, #tpu.memory_space<vmem>>, vector<8x1xf32>
    %cst_17 = arith.constant 9.99999974E-6 : f32
    %27 = vector.broadcast %cst_17 : f32 to vector<8x1xf32>
    %28 = arith.addf %25, %27 : vector<8x1xf32>
    %29 = math.rsqrt %28 : vector<8x1xf32>
    %30 = arith.mulf %26, %29 : vector<8x1xf32>
    %c0_18 = arith.constant 0 : index
    %c0_19 = arith.constant 0 : index
    %31 = vector.load %arg3[%c0_18, %c0_19] : memref<8x1xf32, #tpu.memory_space<vmem>>, vector<8x1xf32>
    %32 = arith.mulf %15, %30 : vector<8x1xf32>
    %33 = arith.subf %31, %32 : vector<8x1xf32>
    %34 = vector.broadcast %30 : vector<8x1xf32> to vector<8x4xf32>
    %35 = arith.mulf %0, %34 : vector<8x4xf32>
    %c0_20 = arith.constant 0 : index
    %c0_21 = arith.constant 0 : index
    %c0_22 = arith.constant 0 : index
    %36 = vector.load %arg0[%c0_20, %c0_21, %c0_22] : memref<2x4x512xf32, #tpu.memory_space<vmem>>, vector<1x4x512xf32>
    %37 = vector.shape_cast %36 : vector<1x4x512xf32> to vector<4x512xf32>
    %cst_23 = arith.constant dense<0.000000e+00> : vector<8x512xf32>
    %38 = tpu.matmul %35, %37, %cst_23 {dimension_numbers = #tpu.dot_dimension_numbers<[1], [0], [0], [1], [0, 0, 1, 1], [], []>} : vector<8x4xf32>, vector<4x512xf32>, vector<8x512xf32> -> vector<8x512xf32>
    %39 = vector.broadcast %33 : vector<8x1xf32> to vector<8x512xf32>
    %40 = arith.addf %38, %39 : vector<8x512xf32>
    %cst_24 = arith.constant 0.000000e+00 : f32
    %41 = vector.broadcast %cst_24 : f32 to vector<8x512xf32>
    %42 = arith.maximumf %40, %41 : vector<8x512xf32>
    %c0_25 = arith.constant 0 : index
    %c0_26 = arith.constant 0 : index
    %c0_27 = arith.constant 0 : index
    %43 = vector.load %arg4[%c0_25, %c0_26, %c0_27] : memref<2x8x512xf32, #tpu.memory_space<vmem>>, vector<1x8x512xf32>
    %44 = vector.shape_cast %43 : vector<1x8x512xf32> to vector<8x512xf32>
    %45 = vector.shape_cast %42 : vector<8x512xf32> to vector<1x8x512xf32>
    tpu.vector_store %arg4[%c0_25, %c0_26, %c0_27], %45 {strides = array<i32>} : memref<2x8x512xf32, #tpu.memory_space<vmem>>, vector<1x8x512xf32>,
    %c1_28 = arith.constant 1 : index
    %c0_29 = arith.constant 0 : index
    %c0_30 = arith.constant 0 : index
    %46 = vector.load %arg0[%c1_28, %c0_29, %c0_30] : memref<2x4x512xf32, #tpu.memory_space<vmem>>, vector<1x4x512xf32>
    %47 = vector.shape_cast %46 : vector<1x4x512xf32> to vector<4x512xf32>
    %cst_31 = arith.constant dense<0.000000e+00> : vector<8x512xf32>
    %48 = tpu.matmul %35, %47, %cst_31 {dimension_numbers = #tpu.dot_dimension_numbers<[1], [0], [0], [1], [0, 0, 1, 1], [], []>} : vector<8x4xf32>, vector<4x512xf32>, vector<8x512xf32> -> vector<8x512xf32>
    %49 = vector.broadcast %33 : vector<8x1xf32> to vector<8x512xf32>
    %50 = arith.addf %48, %49 : vector<8x512xf32>
    %cst_32 = arith.constant 0.000000e+00 : f32
    %51 = vector.broadcast %cst_32 : f32 to vector<8x512xf32>
    %52 = arith.maximumf %50, %51 : vector<8x512xf32>
    %c1_33 = arith.constant 1 : index
    %c0_34 = arith.constant 0 : index
    %c0_35 = arith.constant 0 : index
    %53 = vector.load %arg4[%c1_33, %c0_34, %c0_35] : memref<2x8x512xf32, #tpu.memory_space<vmem>>, vector<1x8x512xf32>
    %54 = vector.shape_cast %53 : vector<1x8x512xf32> to vector<8x512xf32>
    %55 = vector.shape_cast %52 : vector<8x512xf32> to vector<1x8x512xf32>
    tpu.vector_store %arg4[%c1_33, %c0_34, %c0_35], %55 {strides = array<i32>} : memref<2x8x512xf32, #tpu.memory_space<vmem>>, vector<1x8x512xf32>,
    return
  }
}

</mosaic_0001>

<llo_original>
// kernel: tpu_custom_call.1
$region0: #{tpu_custom_call.1}
  #allocation0 [shape = 'u32[]', space=smem, size = 0x4, offset = 0x4, fixed_abs, tag = 'smem constant byte address 0x4 - core index']
  #allocation1 [shape = 'u32[144,128]{1,0:T(1,128)}', space=vmem, size = 0x12000, scoped, tag = 'internal scratch']
  %s0 = inlined_call_operand.hbm [shape: f32[2,4,512], index: 0, kind: input, shape index: {}]
  %s1 = inlined_call_operand.vmem [shape: f32[8,4], index: 1, kind: input, shape index: {}]
  %s2 = inlined_call_operand.vmem [shape: f32[8,1], index: 2, kind: input, shape index: {}]
  %s3 = inlined_call_operand.vmem [shape: f32[8,1], index: 3, kind: input, shape index: {}]
  %s4 = inlined_call_operand.hbm [shape: f32[2,8,512], index: 4, kind: output, shape index: {}]
  %s5 = sld [smem:[#allocation0]]
  $region30: #{tpu_custom_call.1} parent=0
    _
  %s7 = ssub.s32 1, %s5
  %s8 = scalar_select 0, %s7, %s5
  $region1: #{tpu_custom_call.1} parent=0
    #allocation2 [shape = 'u8[16384]{0}', space=vmem, size = 0x4000, scoped, tag = 'input window, operand 0, single buffered']
    #allocation3 [shape = 's32[1]{0}', space=sflag, size = 0x4, scoped, tag = 'scoped memory for tpu_custom_call.1']
    #allocation4 [shape = 's32[1]{0}', space=sflag, size = 0x4, scoped, tag = 'scoped memory for tpu_custom_call.1']
    #allocation5 [shape = 'u8[32768]{0}', space=vmem, size = 0x8000, scoped, tag = 'output window, operand 0, single buffered']
    %9 = vsyncpa [#allocation3], 0
    %10 = vsyncpa [#allocation4], 0
    // Predicated region
    $region2: #{tpu_custom_call.1} parent=1 // pred_check
      _
    $region3: #{tpu_custom_call.1} parent=1 // pred_check_branch
      %12 = sbr.rel (0) target = $region5
    $region4: #{tpu_custom_call.1} parent=1 // pred_region
      %s14 = ssub.s32 512, 512
      %15 = vsyncadd [#allocation3], %s14
      %s16 = sshll.u32 [#allocation2], 4
      %s17 = int_to_ptr.vmem [resolvable:$true] %s16
      %22 = dma.hbm_to_vmem [thread:$0]  %s0, 512, %s17, [#allocation3], 256, 256, 16
    $region5: #{tpu_custom_call.1} parent=1 // pred_fallthru
      _
    // Predicated region
    $region6: #{tpu_custom_call.1} parent=1 // pred_check
      _
    $region7: #{tpu_custom_call.1} parent=1 // pred_check_branch
      %24 = sbr.rel (0) target = $region9
    $region8: #{tpu_custom_call.1} parent=1 // pred_region
      _
    $region9: #{tpu_custom_call.1} parent=1 // pred_fallthru
      _
    // Predicated region
    $region10: #{tpu_custom_call.1} parent=1 // pred_check
      _
    $region11: #{tpu_custom_call.1} parent=1 // pred_check_branch
      %26 = sbr.rel (0) target = $region13
    $region12: #{tpu_custom_call.1} parent=1 // pred_region
      _
    $region13: #{tpu_custom_call.1} parent=1 // pred_fallthru
      _
    // Predicated region
    $region14: #{tpu_custom_call.1} parent=1 // pred_check
      _
    $region15: #{tpu_custom_call.1} parent=1 // pred_check_branch
      %28 = sbr.rel (0) target = $region17
    $region16: #{tpu_custom_call.1} parent=1 // pred_region
      _
    $region17: #{tpu_custom_call.1} parent=1 // pred_fallthru
      _
    // Predicated region
    $region18: #{tpu_custom_call.1} parent=1 // pred_check
      _
    $region19: #{tpu_custom_call.1} parent=1 // pred_check_branch
      %30 = sbr.rel (0) target = $region21
    $region20: #{tpu_custom_call.1} parent=1 // pred_region
      %31 = dma.done [#allocation3], 512
    $region21: #{tpu_custom_call.1} parent=1 // pred_fallthru
      _
    %v32 = vld [vmem:[%s1] sm:$0xff]
    %v33 = vld [vmem:[#allocation2] sm:$0xff]
    %v34 = vld [vmem:[#allocation2 + $0x8] sm:$0xff]
    %v37 = vcombine.high %v33, %v33
    %v38 = vcombine.high %v34, %v34
    %vm41 = vcmask 1043456
    %v42 = vsel %vm41, %v33, 0.0
    %v43 = vsel %vm41, %v37, 0.0
    %v44 = vadd.f32 %v42, %v43
    %v45 = vsel %vm41, %v34, 0.0
    %v46 = vadd.f32 %v44, %v45
    %v47 = vsel %vm41, %v38, 0.0
    %v48 = vadd.f32 %v46, %v47
    %49 = vadd.xlane.f32.xlu0 %v48
    %v50 = vpop.xlane.xlu0 %49
    %s51 = scalar_lea.vmem [#allocation2], 16
    %v52 = vld [vmem:[%s51] sm:$0xff]
    %v53 = vld [vmem:[%s51 + $0x8] sm:$0xff]
    %v56 = vcombine.high %v52, %v52
    %v57 = vcombine.high %v53, %v53
    %60 = vmatprep.subr.mxu0 %v56
    %61 = vmatpush1.xpose.msra.mxu0 %v52
    %62 = vmatprep.subr.mxu0 0.0
    %63 = vmatpush1.xpose.msra.mxu0 0.0
    %64 = vmatprep.subr.mxu0 0.0
    %65 = vmatpush1.xpose.msra.mxu0 0.0
    %66 = vmatprep.subr.mxu0 0.0
    %67 = vmatpush1.xpose.msra.mxu0 0.0
    %68 = vmatprep.subr.mxu0 0.0
    %69 = vmatpush1.xpose.msra.mxu0 0.0
    %70 = vmatprep.subr.mxu0 0.0
    %71 = vmatpush1.xpose.msra.mxu0 0.0
    %72 = vmatprep.subr.mxu0 0.0
    %73 = vmatpush1.xpose.msra.mxu0 0.0
    %74 = vmatprep.subr.mxu0 0.0
    %75 = vmatpush1.xpose.msra.mxu0 0.0
    %76 = vmatprep.subr.mxu0 0.0
    %77 = vmatpush1.xpose.msra.mxu0 0.0
    %78 = vmatprep.subr.mxu0 0.0
    %79 = vmatpush1.xpose.msra.mxu0 0.0
    %80 = vmatprep.subr.mxu0 0.0
    %81 = vmatpush1.xpose.msra.mxu0 0.0
    %82 = vmatprep.subr.mxu0 0.0
    %83 = vmatpush1.xpose.msra.mxu0 0.0
    %84 = vmatprep.subr.mxu0 0.0
    %85 = vmatpush1.xpose.msra.mxu0 0.0
    %86 = vmatprep.subr.mxu0 0.0
    %87 = vmatpush1.xpose.msra.mxu0 0.0
    %88 = vmatprep.subr.mxu0 0.0
    %89 = vmatpush1.xpose.msra.mxu0 0.0
    %90 = vmatprep.subr.mxu0 0.0
    %91 = vmatpush1.xpose.msra.mxu0 0.0
    %92 = vmatprep.subr.mxu0 0.0
    %93 = vmatpush1.xpose.msra.mxu0 0.0
    %94 = vmatprep.subr.mxu0 0.0
    %95 = vmatpush1.xpose.msra.mxu0 0.0
    %96 = vmatprep.subr.mxu0 0.0
    %97 = vmatpush1.xpose.msra.mxu0 0.0
    %98 = vmatprep.subr.mxu0 0.0
    %99 = vmatpush1.xpose.msra.mxu0 0.0
    %100 = vmatprep.subr.mxu0 0.0
    %101 = vmatpush1.xpose.msra.mxu0 0.0
    %102 = vmatprep.subr.mxu0 0.0
    %103 = vmatpush1.xpose.msra.mxu0 0.0
    %104 = vmatprep.subr.mxu0 0.0
    %105 = vmatpush1.xpose.msra.mxu0 0.0
    %106 = vmatprep.subr.mxu0 0.0
    %107 = vmatpush1.xpose.msra.mxu0 0.0
    %108 = vmatprep.subr.mxu0 0.0
    %109 = vmatpush1.xpose.msra.mxu0 0.0
    %110 = vmatprep.subr.mxu0 0.0
    %111 = vmatpush1.xpose.msra.mxu0 0.0
    %112 = vmatprep.subr.mxu0 0.0
    %113 = vmatpush1.xpose.msra.mxu0 0.0
    %114 = vmatprep.subr.mxu0 0.0
    %115 = vmatpush1.xpose.msra.mxu0 0.0
    %116 = vmatprep.subr.mxu0 0.0
    %117 = vmatpush1.xpose.msra.mxu0 0.0
    %118 = vmatprep.subr.mxu0 0.0
    %119 = vmatpush1.xpose.msra.mxu0 0.0
    %120 = vmatprep.subr.mxu0 0.0
    %121 = vmatpush1.xpose.msra.mxu0 0.0
    %122 = vmatprep.subr.mxu0 0.0
    %123 = vmatpush1.xpose.msra.mxu0 0.0
    %124 = vmatprep.mubr.f32.mxu0 %v56
    %125 = vmatmul.mubr.f32.gmra.mrb[0].mxu0 %v52
    %v126 = vpop.f32.mrb[0].mxu0
    %v127 = vadd.f32 0.0, %v126
    %v128 = vpop.f32.mrb[0].mxu0
    %129 = vdwg.mxu0
    %130 = vmatprep.subr.mxu0 %v57
    %131 = vmatpush1.xpose.msra.mxu0 %v53
    %132 = vmatprep.subr.mxu0 0.0
    %133 = vmatpush1.xpose.msra.mxu0 0.0
    %134 = vmatprep.subr.mxu0 0.0
    %135 = vmatpush1.xpose.msra.mxu0 0.0
    %136 = vmatprep.subr.mxu0 0.0
    %137 = vmatpush1.xpose.msra.mxu0 0.0
    %138 = vmatprep.subr.mxu0 0.0
    %139 = vmatpush1.xpose.msra.mxu0 0.0
    %140 = vmatprep.subr.mxu0 0.0
    %141 = vmatpush1.xpose.msra.mxu0 0.0
    %142 = vmatprep.subr.mxu0 0.0
    %143 = vmatpush1.xpose.msra.mxu0 0.0
    %144 = vmatprep.subr.mxu0 0.0
    %145 = vmatpush1.xpose.msra.mxu0 0.0
    %146 = vmatprep.subr.mxu0 0.0
    %147 = vmatpush1.xpose.msra.mxu0 0.0
    %148 = vmatprep.subr.mxu0 0.0
    %149 = vmatpush1.xpose.msra.mxu0 0.0
    %150 = vmatprep.subr.mxu0 0.0
    %151 = vmatpush1.xpose.msra.mxu0 0.0
    %152 = vmatprep.subr.mxu0 0.0
    %153 = vmatpush1.xpose.msra.mxu0 0.0
    %154 = vmatprep.subr.mxu0 0.0
    %155 = vmatpush1.xpose.msra.mxu0 0.0
    %156 = vmatprep.subr.mxu0 0.0
    %157 = vmatpush1.xpose.msra.mxu0 0.0
    %158 = vmatprep.subr.mxu0 0.0
    %159 = vmatpush1.xpose.msra.mxu0 0.0
    %160 = vmatprep.subr.mxu0 0.0
    %161 = vmatpush1.xpose.msra.mxu0 0.0
    %162 = vmatprep.subr.mxu0 0.0
    %163 = vmatpush1.xpose.msra.mxu0 0.0
    %164 = vmatprep.subr.mxu0 0.0
    %165 = vmatpush1.xpose.msra.mxu0 0.0
    %166 = vmatprep.subr.mxu0 0.0
    %167 = vmatpush1.xpose.msra.mxu0 0.0
    %168 = vmatprep.subr.mxu0 0.0
    %169 = vmatpush1.xpose.msra.mxu0 0.0
    %170 = vmatprep.subr.mxu0 0.0
    %171 = vmatpush1.xpose.msra.mxu0 0.0
    %172 = vmatprep.subr.mxu0 0.0
    %173 = vmatpush1.xpose.msra.mxu0 0.0
    %174 = vmatprep.subr.mxu0 0.0
    %175 = vmatpush1.xpose.msra.mxu0 0.0
    %176 = vmatprep.subr.mxu0 0.0
    %177 = vmatpush1.xpose.msra.mxu0 0.0
    %178 = vmatprep.subr.mxu0 0.0
    %179 = vmatpush1.xpose.msra.mxu0 0.0
    %180 = vmatprep.subr.mxu0 0.0
    %181 = vmatpush1.xpose.msra.mxu0 0.0
    %182 = vmatprep.subr.mxu0 0.0
    %183 = vmatpush1.xpose.msra.mxu0 0.0
    %184 = vmatprep.subr.mxu0 0.0
    %185 = vmatpush1.xpose.msra.mxu0 0.0
    %186 = vmatprep.subr.mxu0 0.0
    %187 = vmatpush1.xpose.msra.mxu0 0.0
    %188 = vmatprep.subr.mxu0 0.0
    %189 = vmatpush1.xpose.msra.mxu0 0.0
    %190 = vmatprep.subr.mxu0 0.0
    %191 = vmatpush1.xpose.msra.mxu0 0.0
    %192 = vmatprep.subr.mxu0 0.0
    %193 = vmatpush1.xpose.msra.mxu0 0.0
    %194 = vmatprep.mubr.f32.mxu0 %v57
    %195 = vmatmul.mubr.f32.gmra.mrb[0].mxu0 %v53
    %v196 = vpop.f32.mrb[0].mxu0
    %v197 = vadd.f32 %v127, %v196
    %v198 = vpop.f32.mrb[0].mxu0
    %199 = vdwg.mxu0
    %200 = vmatprep.subr.mxu0 %v37
    %201 = vmatpush1.xpose.msra.mxu0 %v33
    %202 = vmatprep.subr.mxu0 0.0
    %203 = vmatpush1.xpose.msra.mxu0 0.0
    %204 = vmatprep.subr.mxu0 0.0
    %205 = vmatpush1.xpose.msra.mxu0 0.0
    %206 = vmatprep.subr.mxu0 0.0
    %207 = vmatpush1.xpose.msra.mxu0 0.0
    %208 = vmatprep.subr.mxu0 0.0
    %209 = vmatpush1.xpose.msra.mxu0 0.0
    %210 = vmatprep.subr.mxu0 0.0
    %211 = vmatpush1.xpose.msra.mxu0 0.0
    %212 = vmatprep.subr.mxu0 0.0
    %213 = vmatpush1.xpose.msra.mxu0 0.0
    %214 = vmatprep.subr.mxu0 0.0
    %215 = vmatpush1.xpose.msra.mxu0 0.0
    %216 = vmatprep.subr.mxu0 0.0
    %217 = vmatpush1.xpose.msra.mxu0 0.0
    %218 = vmatprep.subr.mxu0 0.0
    %219 = vmatpush1.xpose.msra.mxu0 0.0
    %220 = vmatprep.subr.mxu0 0.0
    %221 = vmatpush1.xpose.msra.mxu0 0.0
    %222 = vmatprep.subr.mxu0 0.0
    %223 = vmatpush1.xpose.msra.mxu0 0.0
    %224 = vmatprep.subr.mxu0 0.0
    %225 = vmatpush1.xpose.msra.mxu0 0.0
    %226 = vmatprep.subr.mxu0 0.0
    %227 = vmatpush1.xpose.msra.mxu0 0.0
    %228 = vmatprep.subr.mxu0 0.0
    %229 = vmatpush1.xpose.msra.mxu0 0.0
    %230 = vmatprep.subr.mxu0 0.0
    %231 = vmatpush1.xpose.msra.mxu0 0.0
    %232 = vmatprep.subr.mxu0 0.0
    %233 = vmatpush1.xpose.msra.mxu0 0.0
    %234 = vmatprep.subr.mxu0 0.0
    %235 = vmatpush1.xpose.msra.mxu0 0.0
    %236 = vmatprep.subr.mxu0 0.0
    %237 = vmatpush1.xpose.msra.mxu0 0.0
    %238 = vmatprep.subr.mxu0 0.0
    %239 = vmatpush1.xpose.msra.mxu0 0.0
    %240 = vmatprep.subr.mxu0 0.0
    %241 = vmatpush1.xpose.msra.mxu0 0.0
    %242 = vmatprep.subr.mxu0 0.0
    %243 = vmatpush1.xpose.msra.mxu0 0.0
    %244 = vmatprep.subr.mxu0 0.0
    %245 = vmatpush1.xpose.msra.mxu0 0.0
    %246 = vmatprep.subr.mxu0 0.0
    %247 = vmatpush1.xpose.msra.mxu0 0.0
    %248 = vmatprep.subr.mxu0 0.0
    %249 = vmatpush1.xpose.msra.mxu0 0.0
    %250 = vmatprep.subr.mxu0 0.0
    %251 = vmatpush1.xpose.msra.mxu0 0.0
    %252 = vmatprep.subr.mxu0 0.0
    %253 = vmatpush1.xpose.msra.mxu0 0.0
    %254 = vmatprep.subr.mxu0 0.0
    %255 = vmatpush1.xpose.msra.mxu0 0.0
    %256 = vmatprep.subr.mxu0 0.0
    %257 = vmatpush1.xpose.msra.mxu0 0.0
    %258 = vmatprep.subr.mxu0 0.0
    %259 = vmatpush1.xpose.msra.mxu0 0.0
    %260 = vmatprep.subr.mxu0 0.0
    %261 = vmatpush1.xpose.msra.mxu0 0.0
    %262 = vmatprep.subr.mxu0 0.0
    %263 = vmatpush1.xpose.msra.mxu0 0.0
    %264 = vmatprep.mubr.f32.mxu0 %v37
    %265 = vmatmul.mubr.f32.gmra.mrb[0].mxu0 %v33
    %v266 = vpop.f32.mrb[0].mxu0
    %v267 = vadd.f32 %v197, %v266
    %v268 = vpop.f32.mrb[0].mxu0
    %269 = vdwg.mxu0
    %270 = vmatprep.subr.mxu0 %v38
    %271 = vmatpush1.xpose.msra.mxu0 %v34
    %272 = vmatprep.subr.mxu0 0.0
    %273 = vmatpush1.xpose.msra.mxu0 0.0
    %274 = vmatprep.subr.mxu0 0.0
    %275 = vmatpush1.xpose.msra.mxu0 0.0
    %276 = vmatprep.subr.mxu0 0.0
    %277 = vmatpush1.xpose.msra.mxu0 0.0
    %278 = vmatprep.subr.mxu0 0.0
    %279 = vmatpush1.xpose.msra.mxu0 0.0
    %280 = vmatprep.subr.mxu0 0.0
    %281 = vmatpush1.xpose.msra.mxu0 0.0
    %282 = vmatprep.subr.mxu0 0.0
    %283 = vmatpush1.xpose.msra.mxu0 0.0
    %284 = vmatprep.subr.mxu0 0.0
    %285 = vmatpush1.xpose.msra.mxu0 0.0
    %286 = vmatprep.subr.mxu0 0.0
    %287 = vmatpush1.xpose.msra.mxu0 0.0
    %288 = vmatprep.subr.mxu0 0.0
    %289 = vmatpush1.xpose.msra.mxu0 0.0
    %290 = vmatprep.subr.mxu0 0.0
    %291 = vmatpush1.xpose.msra.mxu0 0.0
    %292 = vmatprep.subr.mxu0 0.0
    %293 = vmatpush1.xpose.msra.mxu0 0.0
    %294 = vmatprep.subr.mxu0 0.0
    %295 = vmatpush1.xpose.msra.mxu0 0.0
    %296 = vmatprep.subr.mxu0 0.0
    %297 = vmatpush1.xpose.msra.mxu0 0.0
    %298 = vmatprep.subr.mxu0 0.0
    %299 = vmatpush1.xpose.msra.mxu0 0.0
    %300 = vmatprep.subr.mxu0 0.0
    %301 = vmatpush1.xpose.msra.mxu0 0.0
    %302 = vmatprep.subr.mxu0 0.0
    %303 = vmatpush1.xpose.msra.mxu0 0.0
    %304 = vmatprep.subr.mxu0 0.0
    %305 = vmatpush1.xpose.msra.mxu0 0.0
    %306 = vmatprep.subr.mxu0 0.0
    %307 = vmatpush1.xpose.msra.mxu0 0.0
    %308 = vmatprep.subr.mxu0 0.0
    %309 = vmatpush1.xpose.msra.mxu0 0.0
    %310 = vmatprep.subr.mxu0 0.0
    %311 = vmatpush1.xpose.msra.mxu0 0.0
    %312 = vmatprep.subr.mxu0 0.0
    %313 = vmatpush1.xpose.msra.mxu0 0.0
    %314 = vmatprep.subr.mxu0 0.0
    %315 = vmatpush1.xpose.msra.mxu0 0.0
    %316 = vmatprep.subr.mxu0 0.0
    %317 = vmatpush1.xpose.msra.mxu0 0.0
    %318 = vmatprep.subr.mxu0 0.0
    %319 = vmatpush1.xpose.msra.mxu0 0.0
    %320 = vmatprep.subr.mxu0 0.0
    %321 = vmatpush1.xpose.msra.mxu0 0.0
    %322 = vmatprep.subr.mxu0 0.0
    %323 = vmatpush1.xpose.msra.mxu0 0.0
    %324 = vmatprep.subr.mxu0 0.0
    %325 = vmatpush1.xpose.msra.mxu0 0.0
    %326 = vmatprep.subr.mxu0 0.0
    %327 = vmatpush1.xpose.msra.mxu0 0.0
    %328 = vmatprep.subr.mxu0 0.0
    %329 = vmatpush1.xpose.msra.mxu0 0.0
    %330 = vmatprep.subr.mxu0 0.0
    %331 = vmatpush1.xpose.msra.mxu0 0.0
    %332 = vmatprep.subr.mxu0 0.0
    %333 = vmatpush1.xpose.msra.mxu0 0.0
    %334 = vmatprep.mubr.f32.mxu0 %v38
    %335 = vmatmul.mubr.f32.gmra.mrb[0].mxu0 %v34
    %v336 = vpop.f32.mrb[0].mxu0
    %v337 = vadd.f32 %v267, %v336
    %v338 = vpop.f32.mrb[0].mxu0
    %339 = vdwg.mxu0
    %v340 = vsel %vm41, %v52, 0.0
    %v341 = vsel %vm41, %v56, 0.0
    %v342 = vadd.f32 %v340, %v341
    %v343 = vsel %vm41, %v53, 0.0
    %v344 = vadd.f32 %v342, %v343
    %v345 = vsel %vm41, %v57, 0.0
    %v346 = vadd.f32 %v344, %v345
    %347 = vadd.xlane.f32.xlu0 %v346
    %v348 = vpop.xlane.xlu0 %347
    %v349 = vadd.f32 %v50, %v348
    %vm350 = vcmask 31744
    %v352 = vsel %vm350, %v32, 0
    %v355 = vsel %vm41, %v349, 0
    %357 = vmatprep.subr.mxu0 0.0
    %358 = vmatpush1.msra.mxu0 %v355
    %359 = vmatprep.subr.mxu0 0.0
    %360 = vmatpush1.msra.mxu0 0.0
    %361 = vmatprep.subr.mxu0 0.0
    %362 = vmatpush1.msra.mxu0 0.0
    %363 = vmatprep.subr.mxu0 0.0
    %364 = vmatpush1.msra.mxu0 0.0
    %365 = vmatprep.subr.mxu0 0.0
    %366 = vmatpush1.msra.mxu0 0.0
    %367 = vmatprep.subr.mxu0 0.0
    %368 = vmatpush1.msra.mxu0 0.0
    %369 = vmatprep.subr.mxu0 0.0
    %370 = vmatpush1.msra.mxu0 0.0
    %371 = vmatprep.subr.mxu0 0.0
    %372 = vmatpush1.msra.mxu0 0.0
    %373 = vmatprep.subr.mxu0 0.0
    %374 = vmatpush1.msra.mxu0 0.0
    %375 = vmatprep.subr.mxu0 0.0
    %376 = vmatpush1.msra.mxu0 0.0
    %377 = vmatprep.subr.mxu0 0.0
    %378 = vmatpush1.msra.mxu0 0.0
    %379 = vmatprep.subr.mxu0 0.0
    %380 = vmatpush1.msra.mxu0 0.0
    %381 = vmatprep.subr.mxu0 0.0
    %382 = vmatpush1.msra.mxu0 0.0
    %383 = vmatprep.subr.mxu0 0.0
    %384 = vmatpush1.msra.mxu0 0.0
    %385 = vmatprep.subr.mxu0 0.0
    %386 = vmatpush1.msra.mxu0 0.0
    %387 = vmatprep.subr.mxu0 0.0
    %388 = vmatpush1.msra.mxu0 0.0
    %389 = vmatprep.subr.mxu0 0.0
    %390 = vmatpush1.msra.mxu0 0.0
    %391 = vmatprep.subr.mxu0 0.0
    %392 = vmatpush1.msra.mxu0 0.0
    %393 = vmatprep.subr.mxu0 0.0
    %394 = vmatpush1.msra.mxu0 0.0
    %395 = vmatprep.subr.mxu0 0.0
    %396 = vmatpush1.msra.mxu0 0.0
    %397 = vmatprep.subr.mxu0 0.0
    %398 = vmatpush1.msra.mxu0 0.0
    %399 = vmatprep.subr.mxu0 0.0
    %400 = vmatpush1.msra.mxu0 0.0
    %401 = vmatprep.subr.mxu0 0.0
    %402 = vmatpush1.msra.mxu0 0.0
    %403 = vmatprep.subr.mxu0 0.0
    %404 = vmatpush1.msra.mxu0 0.0
    %405 = vmatprep.subr.mxu0 0.0
    %406 = vmatpush1.msra.mxu0 0.0
    %407 = vmatprep.subr.mxu0 0.0
    %408 = vmatpush1.msra.mxu0 0.0
    %409 = vmatprep.subr.mxu0 0.0
    %410 = vmatpush1.msra.mxu0 0.0
    %411 = vmatprep.subr.mxu0 0.0
    %412 = vmatpush1.msra.mxu0 0.0
    %413 = vmatprep.subr.mxu0 0.0
    %414 = vmatpush1.msra.mxu0 0.0
    %415 = vmatprep.subr.mxu0 0.0
    %416 = vmatpush1.msra.mxu0 0.0
    %417 = vmatprep.subr.mxu0 0.0
    %418 = vmatpush1.msra.mxu0 0.0
    %419 = vmatprep.subr.mxu0 0.0
    %420 = vmatpush1.msra.mxu0 0.0
    %421 = vmatprep.mubr.f32.mxu0 0.0
    %422 = vmatmul.mubr.f32.gmra.mrb[0].mxu0 %v352
    %v423 = vpop.f32.mrb[0].mxu0
    %v424 = vadd.f32 0.0, %v423
    %v425 = vpop.f32.mrb[0].mxu0
    %426 = vdwg.mxu0
    %v427 = vrcp.pop 1024.0
    %v428 = vmul.f32 %v424, %v427
    %v430 = vsel %vm41, %v337, 0
    %432 = vmatprep.subr.mxu0 0.0
    %433 = vmatpush1.msra.mxu0 %v430
    %434 = vmatprep.subr.mxu0 0.0
    %435 = vmatpush1.msra.mxu0 0.0
    %436 = vmatprep.subr.mxu0 0.0
    %437 = vmatpush1.msra.mxu0 0.0
    %438 = vmatprep.subr.mxu0 0.0
    %439 = vmatpush1.msra.mxu0 0.0
    %440 = vmatprep.subr.mxu0 0.0
    %441 = vmatpush1.msra.mxu0 0.0
    %442 = vmatprep.subr.mxu0 0.0
    %443 = vmatpush1.msra.mxu0 0.0
    %444 = vmatprep.subr.mxu0 0.0
    %445 = vmatpush1.msra.mxu0 0.0
    %446 = vmatprep.subr.mxu0 0.0
    %447 = vmatpush1.msra.mxu0 0.0
    %448 = vmatprep.subr.mxu0 0.0
    %449 = vmatpush1.msra.mxu0 0.0
    %450 = vmatprep.subr.mxu0 0.0
    %451 = vmatpush1.msra.mxu0 0.0
    %452 = vmatprep.subr.mxu0 0.0
    %453 = vmatpush1.msra.mxu0 0.0
    %454 = vmatprep.subr.mxu0 0.0
    %455 = vmatpush1.msra.mxu0 0.0
    %456 = vmatprep.subr.mxu0 0.0
    %457 = vmatpush1.msra.mxu0 0.0
    %458 = vmatprep.subr.mxu0 0.0
    %459 = vmatpush1.msra.mxu0 0.0
    %460 = vmatprep.subr.mxu0 0.0
    %461 = vmatpush1.msra.mxu0 0.0
    %462 = vmatprep.subr.mxu0 0.0
    %463 = vmatpush1.msra.mxu0 0.0
    %464 = vmatprep.subr.mxu0 0.0
    %465 = vmatpush1.msra.mxu0 0.0
    %466 = vmatprep.subr.mxu0 0.0
    %467 = vmatpush1.msra.mxu0 0.0
    %468 = vmatprep.subr.mxu0 0.0
    %469 = vmatpush1.msra.mxu0 0.0
    %470 = vmatprep.subr.mxu0 0.0
    %471 = vmatpush1.msra.mxu0 0.0
    %472 = vmatprep.subr.mxu0 0.0
    %473 = vmatpush1.msra.mxu0 0.0
    %474 = vmatprep.subr.mxu0 0.0
    %475 = vmatpush1.msra.mxu0 0.0
    %476 = vmatprep.subr.mxu0 0.0
    %477 = vmatpush1.msra.mxu0 0.0
    %478 = vmatprep.subr.mxu0 0.0
    %479 = vmatpush1.msra.mxu0 0.0
    %480 = vmatprep.subr.mxu0 0.0
    %481 = vmatpush1.msra.mxu0 0.0
    %482 = vmatprep.subr.mxu0 0.0
    %483 = vmatpush1.msra.mxu0 0.0
    %484 = vmatprep.subr.mxu0 0.0
    %485 = vmatpush1.msra.mxu0 0.0
    %486 = vmatprep.subr.mxu0 0.0
    %487 = vmatpush1.msra.mxu0 0.0
    %488 = vmatprep.subr.mxu0 0.0
    %489 = vmatpush1.msra.mxu0 0.0
    %490 = vmatprep.subr.mxu0 0.0
    %491 = vmatpush1.msra.mxu0 0.0
    %492 = vmatprep.subr.mxu0 0.0
    %493 = vmatpush1.msra.mxu0 0.0
    %494 = vmatprep.subr.mxu0 0.0
    %495 = vmatpush1.msra.mxu0 0.0
    %496 = vmatprep.mubr.f32.mxu0 0.0
    %497 = vmatmul.mubr.f32.gmra.mrb[0].mxu0 %v352
    %v498 = vpop.f32.mrb[0].mxu0
    %v499 = vadd.f32 0.0, %v498
    %v500 = vpop.f32.mrb[0].mxu0
    %501 = vdwg.mxu0
    %v502 = vmul.f32 %v499, %v32
    %v503 = vsel %vm350, %v502, 0.0
    %504 = vadd.xlane.f32.xlu0 %v503
    %v505 = vpop.xlane.xlu0 %504
    %v506 = vmul.f32 %v505, %v427
    %v507 = vmul.f32 %v428, %v428
    %v508 = vsub.f32 %v506, %v507
    %v509 = vmax.f32 %v508, 0.0
    %v510 = vld [vmem:[%s2] sm:$0xff]
    %v511 = vadd.f32 %v509, 1e-05
    %v512 = vrsqrt.pop %v511
    %v513 = vmul.f32 %v510, %v512
    %v514 = vld [vmem:[%s3] sm:$0xff]
    %v515 = vmul.f32 %v428, %v513
    %v516 = vsub.f32 %v514, %v515
    %518 = vset.pattern.permute.xlu0 0
    %519 = vperm.xlu0 %518, %v513
    %v520 = vpop.permute.xlu0 %519
    %v522 = vmul.f32 %v32, %v520
    %524 = vset.pattern.permute.xlu0 0
    %525 = vperm.xlu0 %524, %v516
    %v526 = vpop.permute.xlu0 %525
    %v529 = vsel %vm350, %v522, 0
    %v531 = vsel %vm41, %v33, 0
    %v533 = vsel %vm41, %v37, 0
    %v535 = vsel %vm41, %v34, 0
    %v537 = vsel %vm41, %v38, 0
    %539 = vmatprep.subr.mxu0 %v533
    %540 = vmatpush1.msra.mxu0 %v531
    %541 = vmatprep.subr.mxu0 0.0
    %542 = vmatpush1.msra.mxu0 0.0
    %543 = vmatprep.subr.mxu0 0.0
    %544 = vmatpush1.msra.mxu0 0.0
    %545 = vmatprep.subr.mxu0 0.0
    %546 = vmatpush1.msra.mxu0 0.0
    %547 = vmatprep.subr.mxu0 0.0
    %548 = vmatpush1.msra.mxu0 0.0
    %549 = vmatprep.subr.mxu0 0.0
    %550 = vmatpush1.msra.mxu0 0.0
    %551 = vmatprep.subr.mxu0 0.0
    %552 = vmatpush1.msra.mxu0 0.0
    %553 = vmatprep.subr.mxu0 0.0
    %554 = vmatpush1.msra.mxu0 0.0
    %555 = vmatprep.subr.mxu0 0.0
    %556 = vmatpush1.msra.mxu0 0.0
    %557 = vmatprep.subr.mxu0 0.0
    %558 = vmatpush1.msra.mxu0 0.0
    %559 = vmatprep.subr.mxu0 0.0
    %560 = vmatpush1.msra.mxu0 0.0
    %561 = vmatprep.subr.mxu0 0.0
    %562 = vmatpush1.msra.mxu0 0.0
    %563 = vmatprep.subr.mxu0 0.0
    %564 = vmatpush1.msra.mxu0 0.0
    %565 = vmatprep.subr.mxu0 0.0
    %566 = vmatpush1.msra.mxu0 0.0
    %567 = vmatprep.subr.mxu0 0.0
    %568 = vmatpush1.msra.mxu0 0.0
    %569 = vmatprep.subr.mxu0 0.0
    %570 = vmatpush1.msra.mxu0 0.0
    %571 = vmatprep.subr.mxu0 0.0
    %572 = vmatpush1.msra.mxu0 0.0
    %573 = vmatprep.subr.mxu0 0.0
    %574 = vmatpush1.msra.mxu0 0.0
    %575 = vmatprep.subr.mxu0 0.0
    %576 = vmatpush1.msra.mxu0 0.0
    %577 = vmatprep.subr.mxu0 0.0
    %578 = vmatpush1.msra.mxu0 0.0
    %579 = vmatprep.subr.mxu0 0.0
    %580 = vmatpush1.msra.mxu0 0.0
    %581 = vmatprep.subr.mxu0 0.0
    %582 = vmatpush1.msra.mxu0 0.0
    %583 = vmatprep.subr.mxu0 0.0
    %584 = vmatpush1.msra.mxu0 0.0
    %585 = vmatprep.subr.mxu0 0.0
    %586 = vmatpush1.msra.mxu0 0.0
    %587 = vmatprep.subr.mxu0 0.0
    %588 = vmatpush1.msra.mxu0 0.0
    %589 = vmatprep.subr.mxu0 0.0
    %590 = vmatpush1.msra.mxu0 0.0
    %591 = vmatprep.subr.mxu0 0.0
    %592 = vmatpush1.msra.mxu0 0.0
    %593 = vmatprep.subr.mxu0 0.0
    %594 = vmatpush1.msra.mxu0 0.0
    %595 = vmatprep.subr.mxu0 0.0
    %596 = vmatpush1.msra.mxu0 0.0
    %597 = vmatprep.subr.mxu0 0.0
    %598 = vmatpush1.msra.mxu0 0.0
    %599 = vmatprep.subr.mxu0 0.0
    %600 = vmatpush1.msra.mxu0 0.0
    %601 = vmatprep.subr.mxu0 0.0
    %602 = vmatpush1.msra.mxu0 0.0
    %603 = vmatprep.mubr.f32.mxu0 0.0
    %604 = vmatmul.mubr.f32.gmra.mrb[0].mxu0 %v529
    %v605 = vpop.f32.mrb[0].mxu0
    %v606 = vadd.f32 %v526, %v605
    %v607 = vpop.f32.mrb[0].mxu0
    %v608 = vadd.f32 %v526, %v607
    %609 = vdwg.mxu0
    %610 = vmatprep.subr.mxu0 %v537
    %611 = vmatpush1.msra.mxu0 %v535
    %612 = vmatprep.subr.mxu0 0.0
    %613 = vmatpush1.msra.mxu0 0.0
    %614 = vmatprep.subr.mxu0 0.0
    %615 = vmatpush1.msra.mxu0 0.0
    %616 = vmatprep.subr.mxu0 0.0
    %617 = vmatpush1.msra.mxu0 0.0
    %618 = vmatprep.subr.mxu0 0.0
    %619 = vmatpush1.msra.mxu0 0.0
    %620 = vmatprep.subr.mxu0 0.0
    %621 = vmatpush1.msra.mxu0 0.0
    %622 = vmatprep.subr.mxu0 0.0
    %623 = vmatpush1.msra.mxu0 0.0
    %624 = vmatprep.subr.mxu0 0.0
    %625 = vmatpush1.msra.mxu0 0.0
    %626 = vmatprep.subr.mxu0 0.0
    %627 = vmatpush1.msra.mxu0 0.0
    %628 = vmatprep.subr.mxu0 0.0
    %629 = vmatpush1.msra.mxu0 0.0
    %630 = vmatprep.subr.mxu0 0.0
    %631 = vmatpush1.msra.mxu0 0.0
    %632 = vmatprep.subr.mxu0 0.0
    %633 = vmatpush1.msra.mxu0 0.0
    %634 = vmatprep.subr.mxu0 0.0
    %635 = vmatpush1.msra.mxu0 0.0
    %636 = vmatprep.subr.mxu0 0.0
    %637 = vmatpush1.msra.mxu0 0.0
    %638 = vmatprep.subr.mxu0 0.0
    %639 = vmatpush1.msra.mxu0 0.0
    %640 = vmatprep.subr.mxu0 0.0
    %641 = vmatpush1.msra.mxu0 0.0
    %642 = vmatprep.subr.mxu0 0.0
    %643 = vmatpush1.msra.mxu0 0.0
    %644 = vmatprep.subr.mxu0 0.0
    %645 = vmatpush1.msra.mxu0 0.0
    %646 = vmatprep.subr.mxu0 0.0
    %647 = vmatpush1.msra.mxu0 0.0
    %648 = vmatprep.subr.mxu0 0.0
    %649 = vmatpush1.msra.mxu0 0.0
    %650 = vmatprep.subr.mxu0 0.0
    %651 = vmatpush1.msra.mxu0 0.0
    %652 = vmatprep.subr.mxu0 0.0
    %653 = vmatpush1.msra.mxu0 0.0
    %654 = vmatprep.subr.mxu0 0.0
    %655 = vmatpush1.msra.mxu0 0.0
    %656 = vmatprep.subr.mxu0 0.0
    %657 = vmatpush1.msra.mxu0 0.0
    %658 = vmatprep.subr.mxu0 0.0
    %659 = vmatpush1.msra.mxu0 0.0
    %660 = vmatprep.subr.mxu0 0.0
    %661 = vmatpush1.msra.mxu0 0.0
    %662 = vmatprep.subr.mxu0 0.0
    %663 = vmatpush1.msra.mxu0 0.0
    %664 = vmatprep.subr.mxu0 0.0
    %665 = vmatpush1.msra.mxu0 0.0
    %666 = vmatprep.subr.mxu0 0.0
    %667 = vmatpush1.msra.mxu0 0.0
    %668 = vmatprep.subr.mxu0 0.0
    %669 = vmatpush1.msra.mxu0 0.0
    %670 = vmatprep.subr.mxu0 0.0
    %671 = vmatpush1.msra.mxu0 0.0
    %672 = vmatprep.subr.mxu0 0.0
    %673 = vmatpush1.msra.mxu0 0.0
    %674 = vmatprep.mubr.f32.mxu0 0.0
    %675 = vmatmul.mubr.f32.gmra.mrb[0].mxu0 %v529
    %v676 = vpop.f32.mrb[0].mxu0
    %v677 = vadd.f32 %v526, %v676
    %v678 = vpop.f32.mrb[0].mxu0
    %v679 = vadd.f32 %v526, %v678
    %680 = vdwg.mxu0
    %v681 = vmax.f32 %v606, 0.0
    %v682 = vmax.f32 %v608, 0.0
    %v683 = vmax.f32 %v677, 0.0
    %v684 = vmax.f32 %v679, 0.0
    %685 = vst [vmem:[#allocation5] sm:$0xff] %v681
    %686 = vst [vmem:[#allocation5 + $0x8] sm:$0xff] %v682
    %687 = vst [vmem:[#allocation5 + $0x10] sm:$0xff] %v683
    %688 = vst [vmem:[#allocation5 + $0x18] sm:$0xff] %v684
    %v689 = vld [vmem:[%s51] sm:$0xff]
    %v690 = vld [vmem:[%s51 + $0x8] sm:$0xff]
    %v693 = vcombine.high %v689, %v689
    %v694 = vcombine.high %v690, %v690
    %v695 = vsel %vm41, %v689, 0
    %v697 = vsel %vm41, %v693, 0
    %v699 = vsel %vm41, %v690, 0
    %v701 = vsel %vm41, %v694, 0
    %703 = vmatprep.subr.mxu0 %v697
    %704 = vmatpush1.msra.mxu0 %v695
    %705 = vmatprep.subr.mxu0 0.0
    %706 = vmatpush1.msra.mxu0 0.0
    %707 = vmatprep.subr.mxu0 0.0
    %708 = vmatpush1.msra.mxu0 0.0
    %709 = vmatprep.subr.mxu0 0.0
    %710 = vmatpush1.msra.mxu0 0.0
    %711 = vmatprep.subr.mxu0 0.0
    %712 = vmatpush1.msra.mxu0 0.0
    %713 = vmatprep.subr.mxu0 0.0
    %714 = vmatpush1.msra.mxu0 0.0
    %715 = vmatprep.subr.mxu0 0.0
    %716 = vmatpush1.msra.mxu0 0.0
    %717 = vmatprep.subr.mxu0 0.0
    %718 = vmatpush1.msra.mxu0 0.0
    %719 = vmatprep.subr.mxu0 0.0
    %720 = vmatpush1.msra.mxu0 0.0
    %721 = vmatprep.subr.mxu0 0.0
    %722 = vmatpush1.msra.mxu0 0.0
    %723 = vmatprep.subr.mxu0 0.0
    %724 = vmatpush1.msra.mxu0 0.0
    %725 = vmatprep.subr.mxu0 0.0
    %726 = vmatpush1.msra.mxu0 0.0
    %727 = vmatprep.subr.mxu0 0.0
    %728 = vmatpush1.msra.mxu0 0.0
    %729 = vmatprep.subr.mxu0 0.0
    %730 = vmatpush1.msra.mxu0 0.0
    %731 = vmatprep.subr.mxu0 0.0
    %732 = vmatpush1.msra.mxu0 0.0
    %733 = vmatprep.subr.mxu0 0.0
    %734 = vmatpush1.msra.mxu0 0.0
    %735 = vmatprep.subr.mxu0 0.0
    %736 = vmatpush1.msra.mxu0 0.0
    %737 = vmatprep.subr.mxu0 0.0
    %738 = vmatpush1.msra.mxu0 0.0
    %739 = vmatprep.subr.mxu0 0.0
    %740 = vmatpush1.msra.mxu0 0.0
    %741 = vmatprep.subr.mxu0 0.0
    %742 = vmatpush1.msra.mxu0 0.0
    %743 = vmatprep.subr.mxu0 0.0
    %744 = vmatpush1.msra.mxu0 0.0
    %745 = vmatprep.subr.mxu0 0.0
    %746 = vmatpush1.msra.mxu0 0.0
    %747 = vmatprep.subr.mxu0 0.0
    %748 = vmatpush1.msra.mxu0 0.0
    %749 = vmatprep.subr.mxu0 0.0
    %750 = vmatpush1.msra.mxu0 0.0
    %751 = vmatprep.subr.mxu0 0.0
    %752 = vmatpush1.msra.mxu0 0.0
    %753 = vmatprep.subr.mxu0 0.0
    %754 = vmatpush1.msra.mxu0 0.0
    %755 = vmatprep.subr.mxu0 0.0
    %756 = vmatpush1.msra.mxu0 0.0
    %757 = vmatprep.subr.mxu0 0.0
    %758 = vmatpush1.msra.mxu0 0.0
    %759 = vmatprep.subr.mxu0 0.0
    %760 = vmatpush1.msra.mxu0 0.0
    %761 = vmatprep.subr.mxu0 0.0
    %762 = vmatpush1.msra.mxu0 0.0
    %763 = vmatprep.subr.mxu0 0.0
    %764 = vmatpush1.msra.mxu0 0.0
    %765 = vmatprep.subr.mxu0 0.0
    %766 = vmatpush1.msra.mxu0 0.0
    %767 = vmatprep.mubr.f32.mxu0 0.0
    %768 = vmatmul.mubr.f32.gmra.mrb[0].mxu0 %v529
    %v769 = vpop.f32.mrb[0].mxu0
    %v770 = vadd.f32 %v526, %v769
    %v771 = vpop.f32.mrb[0].mxu0
    %v772 = vadd.f32 %v526, %v771
    %773 = vdwg.mxu0
    %774 = vmatprep.subr.mxu0 %v701
    %775 = vmatpush1.msra.mxu0 %v699
    %776 = vmatprep.subr.mxu0 0.0
    %777 = vmatpush1.msra.mxu0 0.0
    %778 = vmatprep.subr.mxu0 0.0
    %779 = vmatpush1.msra.mxu0 0.0
    %780 = vmatprep.subr.mxu0 0.0
    %781 = vmatpush1.msra.mxu0 0.0
    %782 = vmatprep.subr.mxu0 0.0
    %783 = vmatpush1.msra.mxu0 0.0
    %784 = vmatprep.subr.mxu0 0.0
    %785 = vmatpush1.msra.mxu0 0.0
    %786 = vmatprep.subr.mxu0 0.0
    %787 = vmatpush1.msra.mxu0 0.0
    %788 = vmatprep.subr.mxu0 0.0
    %789 = vmatpush1.msra.mxu0 0.0
    %790 = vmatprep.subr.mxu0 0.0
    %791 = vmatpush1.msra.mxu0 0.0
    %792 = vmatprep.subr.mxu0 0.0
    %793 = vmatpush1.msra.mxu0 0.0
    %794 = vmatprep.subr.mxu0 0.0
    %795 = vmatpush1.msra.mxu0 0.0
    %796 = vmatprep.subr.mxu0 0.0
    %797 = vmatpush1.msra.mxu0 0.0
    %798 = vmatprep.subr.mxu0 0.0
    %799 = vmatpush1.msra.mxu0 0.0
    %800 = vmatprep.subr.mxu0 0.0
    %801 = vmatpush1.msra.mxu0 0.0
    %802 = vmatprep.subr.mxu0 0.0
    %803 = vmatpush1.msra.mxu0 0.0
    %804 = vmatprep.subr.mxu0 0.0
    %805 = vmatpush1.msra.mxu0 0.0
    %806 = vmatprep.subr.mxu0 0.0
    %807 = vmatpush1.msra.mxu0 0.0
    %808 = vmatprep.subr.mxu0 0.0
    %809 = vmatpush1.msra.mxu0 0.0
    %810 = vmatprep.subr.mxu0 0.0
    %811 = vmatpush1.msra.mxu0 0.0
    %812 = vmatprep.subr.mxu0 0.0
    %813 = vmatpush1.msra.mxu0 0.0
    %814 = vmatprep.subr.mxu0 0.0
    %815 = vmatpush1.msra.mxu0 0.0
    %816 = vmatprep.subr.mxu0 0.0
    %817 = vmatpush1.msra.mxu0 0.0
    %818 = vmatprep.subr.mxu0 0.0
    %819 = vmatpush1.msra.mxu0 0.0
    %820 = vmatprep.subr.mxu0 0.0
    %821 = vmatpush1.msra.mxu0 0.0
    %822 = vmatprep.subr.mxu0 0.0
    %823 = vmatpush1.msra.mxu0 0.0
    %824 = vmatprep.subr.mxu0 0.0
    %825 = vmatpush1.msra.mxu0 0.0
    %826 = vmatprep.subr.mxu0 0.0
    %827 = vmatpush1.msra.mxu0 0.0
    %828 = vmatprep.subr.mxu0 0.0
    %829 = vmatpush1.msra.mxu0 0.0
    %830 = vmatprep.subr.mxu0 0.0
    %831 = vmatpush1.msra.mxu0 0.0
    %832 = vmatprep.subr.mxu0 0.0
    %833 = vmatpush1.msra.mxu0 0.0
    %834 = vmatprep.subr.mxu0 0.0
    %835 = vmatpush1.msra.mxu0 0.0
    %836 = vmatprep.subr.mxu0 0.0
    %837 = vmatpush1.msra.mxu0 0.0
    %838 = vmatprep.mubr.f32.mxu0 0.0
    %839 = vmatmul.mubr.f32.gmra.mrb[0].mxu0 %v529
    %v840 = vpop.f32.mrb[0].mxu0
    %v841 = vadd.f32 %v526, %v840
    %v842 = vpop.f32.mrb[0].mxu0
    %v843 = vadd.f32 %v526, %v842
    %844 = vdwg.mxu0
    %v845 = vmax.f32 %v770, 0.0
    %v846 = vmax.f32 %v772, 0.0
    %v847 = vmax.f32 %v841, 0.0
    %v848 = vmax.f32 %v843, 0.0
    %s849 = scalar_lea.vmem [#allocation5], 32
    %850 = vst [vmem:[%s849] sm:$0xff] %v845
    %851 = vst [vmem:[%s849 + $0x8] sm:$0xff] %v846
    %852 = vst [vmem:[%s849 + $0x10] sm:$0xff] %v847
    %853 = vst [vmem:[%s849 + $0x18] sm:$0xff] %v848
    // Predicated region
    $region22: #{tpu_custom_call.1} parent=1 // pred_check
      _
    $region23: #{tpu_custom_call.1} parent=1 // pred_check_branch
      %855 = sbr.rel (0) target = $region25
    $region24: #{tpu_custom_call.1} parent=1 // pred_region
      %s857 = ssub.s32 1024, 1024
      %858 = vsyncadd [#allocation4], %s857
      %s859 = sshll.u32 [#allocation5], 4
      %s860 = int_to_ptr.vmem [resolvable:$true] %s859
      %865 = dma.vmem_to_hbm [thread:$0]  %s860, 1024, %s4, [#allocation4], 512, 512, 32
    $region25: #{tpu_custom_call.1} parent=1 // pred_fallthru
      _
    // Predicated region
    $region26: #{tpu_custom_call.1} parent=1 // pred_check
      _
    $region27: #{tpu_custom_call.1} parent=1 // pred_check_branch
      %867 = sbr.rel (0) target = $region29
    $region28: #{tpu_custom_call.1} parent=1 // pred_region
      %868 = dma.done [#allocation4], 1024
    $region29: #{tpu_custom_call.1} parent=1 // pred_fallthru
      _
    %869 = vsyncpa [#allocation3], 1
    %870 = vsyncpa [#allocation4], 1

</llo_original>
